<compile_context>
chip_gen: v7x
topology: tpu7x:2x2x1
jax: 0.10.0
libtpu: 0.0.40
codegen_flags: <defaults>
</compile_context>

<pallas_src>
import jax
import jax.numpy as jnp
from jax.experimental import pallas as pl
from jax.experimental.pallas import tpu as pltpu

# ---- config (stand-in for config_ddpm.yaml; standard DDPM values) ----
MIN_BETA = 1e-4
MAX_BETA = 0.02
N_STEPS = 1000

# Target bytes per (double-buffered) input/output tile. 2 MiB per buffer
# => ~12 MiB live with 2 inputs + 1 output double-buffered: fits v5e's 16 MiB
# scoped default, v6e's 32 MiB default, and v7x's 64 MiB physical VMEM.
_TARGET_TILE_BYTES = 2 * 1024 * 1024
_VMEM_LIMIT_BYTES = 32 * 1024 * 1024


def _ddpm_kernel(sab_ref, somab_ref, x0_ref, eta_ref, out_ref):
    # sab_ref/somab_ref: (block_n, 1) f32 in VMEM; broadcast over lanes.
    out_ref[...] = sab_ref[...] * x0_ref[...] + somab_ref[...] * eta_ref[...]


def ddpm_forward(x0, t, eta, alpha_bars):
    """Pallas implementation of MyDDPM.forward.

    x0, eta: (N, C, H, W) float32 (NCHW, same as PyTorch)
    t:       (N,) int32 timestep indices
    alpha_bars: (n_steps,) float32 cumulative alpha products
    returns: (N, C, H, W) float32
    """
    n, c, h, w = x0.shape
    chw = c * h * w

    # Per-batch scalars (tiny; XLA fuses this prep).
    a_bar = alpha_bars[t]                                    # (N,)
    sqrt_ab = jnp.sqrt(a_bar).astype(x0.dtype)               # (N,)
    sqrt_omab = jnp.sqrt(1.0 - a_bar).astype(x0.dtype)       # (N,)

    # Flatten to (N, C*H*W): lane dim = full extent (lane-dense when CHW is a
    # multiple of 128, e.g. 1024 here).
    x0_r = x0.reshape(n, chw)
    eta_r = eta.reshape(n, chw)
    sab_r = sqrt_ab.reshape(n, 1)
    somab_r = sqrt_omab.reshape(n, 1)

    # Pick rows-per-block so one tile is ~_TARGET_TILE_BYTES.
    bytes_per_row = chw * x0.dtype.itemsize
    rows_target = max(1, _TARGET_TILE_BYTES // bytes_per_row)
    if rows_target >= 8:
        rows_target = (rows_target // 8) * 8                 # sublane-aligned

    if n <= rows_target:
        # Whole batch in one block: block row dim == full array extent (legal
        # even when n is not a multiple of 8).
        block_n = n
        n_pad = n
    else:
        block_n = rows_target
        n_pad = pl.cdiv(n, block_n) * block_n
        if n_pad != n:
            pad = n_pad - n
            x0_r = jnp.pad(x0_r, ((0, pad), (0, 0)))
            eta_r = jnp.pad(eta_r, ((0, pad), (0, 0)))
            sab_r = jnp.pad(sab_r, ((0, pad), (0, 0)))
            somab_r = jnp.pad(somab_r, ((0, pad), (0, 0)))

    grid = (n_pad // block_n,)

    out = pl.pallas_call(
        _ddpm_kernel,
        out_shape=jax.ShapeDtypeStruct((n_pad, chw), x0.dtype),
        grid=grid,
        in_specs=[
            pl.BlockSpec((block_n, 1), lambda i: (i, 0)),        # sqrt(a_bar)
            pl.BlockSpec((block_n, 1), lambda i: (i, 0)),        # sqrt(1-a_bar)
            pl.BlockSpec((block_n, chw), lambda i: (i, 0)),      # x0
            pl.BlockSpec((block_n, chw), lambda i: (i, 0)),      # eta
        ],
        out_specs=pl.BlockSpec((block_n, chw), lambda i: (i, 0)),
        compiler_params=pltpu.CompilerParams(
            dimension_semantics=("parallel",),
            vmem_limit_bytes=_VMEM_LIMIT_BYTES,
        ),
    )(sab_r, somab_r, x0_r, eta_r)

    if n_pad != n:
        out = out[:n]
    return out.reshape(n, c, h, w)


def make_schedule(min_beta=MIN_BETA, max_beta=MAX_BETA, n_steps=N_STEPS):
    betas = jnp.linspace(min_beta, max_beta, n_steps, dtype=jnp.float32)
    alphas = 1.0 - betas
    alpha_bars = jnp.cumprod(alphas)              # matches prod(alphas[:i+1])
    return betas, alphas, alpha_bars


if __name__ == "__main__":
    # small shapes consistent with the forward (image_chw-style input)
    N, C, H, W = 2, 4, 16, 16

    key = jax.random.PRNGKey(0)
    kx, ke, kt = jax.random.split(key, 3)
    x0 = jax.random.normal(kx, (N, C, H, W), dtype=jnp.float32)
    eta = jax.random.normal(ke, (N, C, H, W), dtype=jnp.float32)
    t = jax.random.randint(kt, (N,), 0, N_STEPS, dtype=jnp.int32)

    _, _, alpha_bars = make_schedule()

    noisy = ddpm_forward(x0, t, eta, alpha_bars)
    noisy = jax.block_until_ready(noisy)

    # reference check (plain JAX, same math as the PyTorch forward)
    a_bar = alpha_bars[t]
    ref = (jnp.sqrt(a_bar).reshape(N, 1, 1, 1) * x0
           + jnp.sqrt(1.0 - a_bar).reshape(N, 1, 1, 1) * eta)
    assert jnp.allclose(noisy, ref, atol=1e-6, rtol=1e-6)

    print("KERNEL_OK")
</pallas_src>

<mosaic_0001>
module attributes {stable_mosaic.version = 11 : i64} {
  func.func @_ddpm_kernel(%arg0: i32, %arg1: memref<2x1xf32, #tpu.memory_space<vmem>>, %arg2: memref<2x1xf32, #tpu.memory_space<vmem>>, %arg3: memref<2x1024xf32, #tpu.memory_space<vmem>>, %arg4: memref<2x1024xf32, #tpu.memory_space<vmem>>, %arg5: memref<2x1024xf32, #tpu.memory_space<vmem>>) attributes {dimension_semantics = [#tpu.dimension_semantics<parallel>], iteration_bounds = array<i64: 1>, scalar_prefetch = 0 : i64, scratch_operands = 0 : i64, tpu.core_type = #tpu.core_type<tc>, window_params = [{transform_indices = @transform_0, window_bounds = array<i64: 2, 1>}, {transform_indices = @transform_1, window_bounds = array<i64: 2, 1>}, {transform_indices = @transform_2, window_bounds = array<i64: 2, 1024>}, {transform_indices = @transform_3, window_bounds = array<i64: 2, 1024>}, {transform_indices = @transform_4, window_bounds = array<i64: 2, 1024>}]} {
    %c0 = arith.constant 0 : index
    %c0_0 = arith.constant 0 : index
    %0 = vector.load %arg1[%c0, %c0_0] : memref<2x1xf32, #tpu.memory_space<vmem>>, vector<2x1xf32>
    %c0_1 = arith.constant 0 : index
    %c0_2 = arith.constant 0 : index
    %1 = vector.load %arg3[%c0_1, %c0_2] : memref<2x1024xf32, #tpu.memory_space<vmem>>, vector<2x1024xf32>
    %2 = vector.broadcast %0 : vector<2x1xf32> to vector<2x1024xf32>
    %3 = arith.mulf %2, %1 : vector<2x1024xf32>
    %c0_3 = arith.constant 0 : index
    %c0_4 = arith.constant 0 : index
    %4 = vector.load %arg2[%c0_3, %c0_4] : memref<2x1xf32, #tpu.memory_space<vmem>>, vector<2x1xf32>
    %c0_5 = arith.constant 0 : index
    %c0_6 = arith.constant 0 : index
    %5 = vector.load %arg4[%c0_5, %c0_6] : memref<2x1024xf32, #tpu.memory_space<vmem>>, vector<2x1024xf32>
    %6 = vector.broadcast %4 : vector<2x1xf32> to vector<2x1024xf32>
    %7 = arith.mulf %6, %5 : vector<2x1024xf32>
    %8 = arith.addf %3, %7 : vector<2x1024xf32>
    %c0_7 = arith.constant 0 : index
    %c0_8 = arith.constant 0 : index
    %9 = vector.load %arg5[%c0_7, %c0_8] : memref<2x1024xf32, #tpu.memory_space<vmem>>, vector<2x1024xf32>
    tpu.vector_store %arg5[%c0_7, %c0_8], %8 {strides = array<i32>} : memref<2x1024xf32, #tpu.memory_space<vmem>>, vector<2x1024xf32>,
    return
  }
  func.func @transform_0(%arg0: i32) -> (i32, i32) {
    %c0_i32 = arith.constant 0 : i32
    %c0_i32_0 = arith.constant 0 : i32
    return %arg0, %c0_i32 : i32, i32
  }
  func.func @transform_1(%arg0: i32) -> (i32, i32) {
    %c0_i32 = arith.constant 0 : i32
    %c0_i32_0 = arith.constant 0 : i32
    return %arg0, %c0_i32 : i32, i32
  }
  func.func @transform_2(%arg0: i32) -> (i32, i32) {
    %c0_i32 = arith.constant 0 : i32
    %c0_i32_0 = arith.constant 0 : i32
    return %arg0, %c0_i32 : i32, i32
  }
  func.func @transform_3(%arg0: i32) -> (i32, i32) {
    %c0_i32 = arith.constant 0 : i32
    %c0_i32_0 = arith.constant 0 : i32
    return %arg0, %c0_i32 : i32, i32
  }
  func.func @transform_4(%arg0: i32) -> (i32, i32) {
    %c0_i32 = arith.constant 0 : i32
    %c0_i32_0 = arith.constant 0 : i32
    return %arg0, %c0_i32 : i32, i32
  }
}

</mosaic_0001>

<llo_original>
// kernel: tpu_custom_call.1
$region0: #{tpu_custom_call.1}
  #allocation0 [shape = 'u32[]', space=smem, size = 0x4, offset = 0x4, fixed_abs, tag = 'smem constant byte address 0x4 - core index']
  #allocation1 [shape = 'u32[144,128]{1,0:T(1,128)}', space=vmem, size = 0x12000, scoped, tag = 'internal scratch']
  %s0 = inlined_call_operand.vmem [shape: f32[2,1], index: 0, kind: input, shape index: {}]
  %s1 = inlined_call_operand.vmem [shape: f32[2,1], index: 1, kind: input, shape index: {}]
  %s2 = inlined_call_operand.hbm [shape: f32[2,1024], index: 2, kind: input, shape index: {}]
  %s3 = inlined_call_operand.vmem [shape: f32[2,1024], index: 3, kind: input, shape index: {}]
  %s4 = inlined_call_operand.hbm [shape: f32[2,1024], index: 4, kind: output, shape index: {}]
  %s5 = sld [smem:[#allocation0]]
  $region30: #{tpu_custom_call.1} parent=0
    _
  %s7 = ssub.s32 1, %s5
  %s8 = scalar_select 0, %s7, %s5
  $region1: #{tpu_custom_call.1} parent=0
    #allocation2 [shape = 'u8[8192]{0}', space=vmem, size = 0x2000, scoped, tag = 'input window, operand 2, single buffered']
    #allocation3 [shape = 's32[1]{0}', space=sflag, size = 0x4, scoped, tag = 'scoped memory for tpu_custom_call.1']
    #allocation4 [shape = 's32[1]{0}', space=sflag, size = 0x4, scoped, tag = 'scoped memory for tpu_custom_call.1']
    #allocation5 [shape = 'u8[8192]{0}', space=vmem, size = 0x2000, scoped, tag = 'output window, operand 0, single buffered']
    %9 = vsyncpa [#allocation3], 0
    %10 = vsyncpa [#allocation4], 0
    // Predicated region
    $region2: #{tpu_custom_call.1} parent=1 // pred_check
      _
    $region3: #{tpu_custom_call.1} parent=1 // pred_check_branch
      %12 = sbr.rel (0) target = $region5
    $region4: #{tpu_custom_call.1} parent=1 // pred_region
      _
    $region5: #{tpu_custom_call.1} parent=1 // pred_fallthru
      _
    // Predicated region
    $region6: #{tpu_custom_call.1} parent=1 // pred_check
      _
    $region7: #{tpu_custom_call.1} parent=1 // pred_check_branch
      %14 = sbr.rel (0) target = $region9
    $region8: #{tpu_custom_call.1} parent=1 // pred_region
      _
    $region9: #{tpu_custom_call.1} parent=1 // pred_fallthru
      _
    // Predicated region
    $region10: #{tpu_custom_call.1} parent=1 // pred_check
      _
    $region11: #{tpu_custom_call.1} parent=1 // pred_check_branch
      %16 = sbr.rel (0) target = $region13
    $region12: #{tpu_custom_call.1} parent=1 // pred_region
      %s18 = ssub.s32 256, 256
      %19 = vsyncadd [#allocation3], %s18
      %s21 = sshll.u32 [#allocation2], 4
      %s22 = int_to_ptr.vmem [resolvable:$true] %s21
      %24 = dma.hbm_to_vmem [thread:$0]  %s2, 256, %s22, [#allocation3]
    $region13: #{tpu_custom_call.1} parent=1 // pred_fallthru
      _
    // Predicated region
    $region14: #{tpu_custom_call.1} parent=1 // pred_check
      _
    $region15: #{tpu_custom_call.1} parent=1 // pred_check_branch
      %26 = sbr.rel (0) target = $region17
    $region16: #{tpu_custom_call.1} parent=1 // pred_region
      _
    $region17: #{tpu_custom_call.1} parent=1 // pred_fallthru
      _
    // Predicated region
    $region18: #{tpu_custom_call.1} parent=1 // pred_check
      _
    $region19: #{tpu_custom_call.1} parent=1 // pred_check_branch
      %28 = sbr.rel (0) target = $region21
    $region20: #{tpu_custom_call.1} parent=1 // pred_region
      %29 = dma.done [#allocation3], 256
    $region21: #{tpu_custom_call.1} parent=1 // pred_fallthru
      _
    %v30 = vld [vmem:[%s0] sm:$0x3]
    %v31 = vld [vmem:[#allocation2] sm:$0xff]
    %v32 = vld [vmem:[#allocation2 + $0x8] sm:$0xff]
    %34 = vset.pattern.permute.xlu0 0
    %35 = vperm.xlu0 %34, %v30
    %v36 = vpop.permute.xlu0 %35
    %v40 = vcombine.high %v31, %v31
    %v42 = vunpack.c.l.s4 1983009808
    %v43 = vunpack.c.0.s8 %v42
    %v44 = vlaneseq
    %v45 = vshrl.u32 %v44, 7
    %v46 = vsub.s32 %v43, %v45
    %v47 = vrot.slane %v31, %v46
    %v49 = vunpack.c.l.s4 1983009808
    %v50 = vunpack.c.0.s8 %v49
    %v51 = vlaneseq
    %v52 = vshrl.u32 %v51, 7
    %v53 = vsub.s32 %v50, %v52
    %v54 = vrot.slane %v40, %v53
    %v55 = vcombine.high %v47, %v47
    %v56 = vcombine.high %v54, %v54
    %v57 = vcombine.high %v32, %v32
    %v59 = vunpack.c.l.s4 1983009808
    %v60 = vunpack.c.0.s8 %v59
    %v61 = vlaneseq
    %v62 = vshrl.u32 %v61, 7
    %v63 = vsub.s32 %v60, %v62
    %v64 = vrot.slane %v32, %v63
    %v66 = vunpack.c.l.s4 1983009808
    %v67 = vunpack.c.0.s8 %v66
    %v68 = vlaneseq
    %v69 = vshrl.u32 %v68, 7
    %v70 = vsub.s32 %v67, %v69
    %v71 = vrot.slane %v57, %v70
    %v72 = vcombine.high %v64, %v64
    %v73 = vcombine.high %v71, %v71
    %v82 = vmul.f32 %v36, %v47
    %v83 = vmul.f32 %v36, %v55
    %v84 = vmul.f32 %v36, %v54
    %v85 = vmul.f32 %v36, %v56
    %v86 = vmul.f32 %v36, %v64
    %v87 = vmul.f32 %v36, %v72
    %v88 = vmul.f32 %v36, %v71
    %v89 = vmul.f32 %v36, %v73
    %v90 = vld [vmem:[%s1] sm:$0x3]
    %v91 = vld [vmem:[%s3] sm:$0xff]
    %v92 = vld [vmem:[%s3 + $0x8] sm:$0xff]
    %94 = vset.pattern.permute.xlu0 0
    %95 = vperm.xlu0 %94, %v90
    %v96 = vpop.permute.xlu0 %95
    %v100 = vcombine.high %v91, %v91
    %v102 = vunpack.c.l.s4 1983009808
    %v103 = vunpack.c.0.s8 %v102
    %v104 = vlaneseq
    %v105 = vshrl.u32 %v104, 7
    %v106 = vsub.s32 %v103, %v105
    %v107 = vrot.slane %v91, %v106
    %v109 = vunpack.c.l.s4 1983009808
    %v110 = vunpack.c.0.s8 %v109
    %v111 = vlaneseq
    %v112 = vshrl.u32 %v111, 7
    %v113 = vsub.s32 %v110, %v112
    %v114 = vrot.slane %v100, %v113
    %v115 = vcombine.high %v107, %v107
    %v116 = vcombine.high %v114, %v114
    %v117 = vcombine.high %v92, %v92
    %v119 = vunpack.c.l.s4 1983009808
    %v120 = vunpack.c.0.s8 %v119
    %v121 = vlaneseq
    %v122 = vshrl.u32 %v121, 7
    %v123 = vsub.s32 %v120, %v122
    %v124 = vrot.slane %v92, %v123
    %v126 = vunpack.c.l.s4 1983009808
    %v127 = vunpack.c.0.s8 %v126
    %v128 = vlaneseq
    %v129 = vshrl.u32 %v128, 7
    %v130 = vsub.s32 %v127, %v129
    %v131 = vrot.slane %v117, %v130
    %v132 = vcombine.high %v124, %v124
    %v133 = vcombine.high %v131, %v131
    %v142 = vmul.f32 %v96, %v107
    %v143 = vmul.f32 %v96, %v115
    %v144 = vmul.f32 %v96, %v114
    %v145 = vmul.f32 %v96, %v116
    %v146 = vmul.f32 %v96, %v124
    %v147 = vmul.f32 %v96, %v132
    %v148 = vmul.f32 %v96, %v131
    %v149 = vmul.f32 %v96, %v133
    %v150 = vadd.f32 %v82, %v142
    %v151 = vadd.f32 %v83, %v143
    %v152 = vadd.f32 %v84, %v144
    %v153 = vadd.f32 %v85, %v145
    %v154 = vadd.f32 %v86, %v146
    %v155 = vadd.f32 %v87, %v147
    %v156 = vadd.f32 %v88, %v148
    %v157 = vadd.f32 %v89, %v149
    %v166 = vcombine.low %v150, %v151
    %v167 = vcombine.low %v152, %v153
    %v169 = vunpack.c.l.s4 1983009808
    %v170 = vunpack.c.0.s8 %v169
    %v171 = vlaneseq
    %v172 = vshrl.u32 %v171, 7
    %v173 = vsub.s32 %v170, %v172
    %v174 = vrot.slane %v166, %v173
    %v176 = vunpack.c.l.s4 1983009808
    %v177 = vunpack.c.0.s8 %v176
    %v178 = vlaneseq
    %v179 = vshrl.u32 %v178, 7
    %v180 = vsub.s32 %v177, %v179
    %v181 = vrot.slane %v167, %v180
    %v182 = vcombine.low %v174, %v181
    %v183 = vcombine.low %v154, %v155
    %v184 = vcombine.low %v156, %v157
    %v186 = vunpack.c.l.s4 1983009808
    %v187 = vunpack.c.0.s8 %v186
    %v188 = vlaneseq
    %v189 = vshrl.u32 %v188, 7
    %v190 = vsub.s32 %v187, %v189
    %v191 = vrot.slane %v183, %v190
    %v193 = vunpack.c.l.s4 1983009808
    %v194 = vunpack.c.0.s8 %v193
    %v195 = vlaneseq
    %v196 = vshrl.u32 %v195, 7
    %v197 = vsub.s32 %v194, %v196
    %v198 = vrot.slane %v184, %v197
    %v199 = vcombine.low %v191, %v198
    %202 = vst [vmem:[#allocation5] sm:$0xff] %v182
    %203 = vst [vmem:[#allocation5 + $0x8] sm:$0xff] %v199
    // Predicated region
    $region22: #{tpu_custom_call.1} parent=1 // pred_check
      _
    $region23: #{tpu_custom_call.1} parent=1 // pred_check_branch
      %205 = sbr.rel (0) target = $region25
    $region24: #{tpu_custom_call.1} parent=1 // pred_region
      %s207 = ssub.s32 256, 256
      %208 = vsyncadd [#allocation4], %s207
      %s210 = sshll.u32 [#allocation5], 4
      %s211 = int_to_ptr.vmem [resolvable:$true] %s210
      %213 = dma.vmem_to_hbm [thread:$0]  %s211, 256, %s4, [#allocation4]
    $region25: #{tpu_custom_call.1} parent=1 // pred_fallthru
      _
    // Predicated region
    $region26: #{tpu_custom_call.1} parent=1 // pred_check
      _
    $region27: #{tpu_custom_call.1} parent=1 // pred_check_branch
      %215 = sbr.rel (0) target = $region29
    $region28: #{tpu_custom_call.1} parent=1 // pred_region
      %216 = dma.done [#allocation4], 256
    $region29: #{tpu_custom_call.1} parent=1 // pred_fallthru
      _
    %217 = vsyncpa [#allocation3], 1
    %218 = vsyncpa [#allocation4], 1

</llo_original>
